<compile_context>
chip_gen: v5e
topology: v5e:2x2
jax: 0.10.0
libtpu: 0.0.40
codegen_flags: <defaults>
</compile_context>

<pallas_src>
import functools

import jax
import jax.numpy as jnp
from jax.experimental import pallas as pl
from jax.experimental.pallas import tpu as pltpu


_LANE = 128
_MAX_TILE_LANES = 65536   # ~1-2.5 MiB of double-buffered slabs: safe on v5e/v6e/v7x
_MIN_GRID_STEPS = 8       # keep both v7x TensorCores busy (v5e/v6e: harmless)


def _round_up(n, m):
    return ((n + m - 1) // m) * m


def _cdiv(a, b):
    return -(-a // b)


def _pick_tile(S, B):
    """Largest lane-aligned pixel tile, capped by VMEM budget and grid balance."""
    tile = min(_MAX_TILE_LANES, _round_up(S, _LANE))
    # Keep >= _MIN_GRID_STEPS total grid steps so megacore sharding has work.
    min_tiles = max(1, _cdiv(_MIN_GRID_STEPS, max(B, 1)))
    if _cdiv(S, tile) < min_tiles:
        tile = max(_LANE, _round_up(_cdiv(S, min_tiles), _LANE))
    return tile


def _pick_subblock(tile_n, max_ch):
    """Lane width of the in-register sub-block: keep the widest live
    activation (~max_ch x sub, f32) around <=16 vregs."""
    budget_lanes = max(_LANE, (16 * 1024) // max(max_ch, 1))
    for cand in (1024, 512, 256, 128):
        if cand <= budget_lanes and tile_n % cand == 0:
            return cand
    return _LANE  # tile_n is always a multiple of 128


# ----------------------------------------------------------------------------
# Pallas kernel: fused chain of (matmul + bias [+ SiLU]) over a pixel tile,
# processed in lane sub-blocks that stay in vregs (no intermediate VMEM home).
#   x_ref   : (C_in, tile_n)   input slab (bf16/f32), channels in sublanes
#   w_i     : (C_out, C_in)    resident weight (same dtype as x)
#   b_i     : (C_out, 1)       resident bias (f32)
#   out_ref : (out_dim, tile_n) f32
# ----------------------------------------------------------------------------
def _projector_kernel(n_layers, sub, n_sub, *refs):
    x_ref = refs[0]
    wb_refs = refs[1:1 + 2 * n_layers]
    out_ref = refs[1 + 2 * n_layers]

    act_dtype = x_ref.dtype
    # Hoist resident weights/biases out of the sub-block loop (loaded once).
    ws = [wb_refs[2 * li][...] for li in range(n_layers)]        # (C_out, C_in)
    bs = [wb_refs[2 * li + 1][...] for li in range(n_layers)]    # (C_out, 1) f32

    def body(i, carry):
        start = pl.multiple_of(i * sub, sub)
        h = x_ref[:, pl.ds(start, sub)]                          # (C_in, sub)
        for li in range(n_layers):
            y = jnp.dot(ws[li], h, preferred_element_type=jnp.float32) + bs[li]
            if li < n_layers - 1:
                # SiLU in f32: exp + approx reciprocal both ride the EUP slot.
                y = y * pl.reciprocal(1.0 + jnp.exp(-y), approx=True)
                h = y.astype(act_dtype)
            else:
                out_ref[:, pl.ds(start, sub)] = y.astype(out_ref.dtype)
        return carry

    jax.lax.fori_loop(0, n_sub, body, 0)


def _run_projector(x3, weights, biases, *, act_dtype=jnp.bfloat16,
                   out_dtype=jnp.float32):
    """x3: (B, C_in, S).  weights[i]: (C_out, C_in).  biases[i]: (C_out, 1)."""
    n_layers = len(weights)
    B, C_in, S = x3.shape
    out_dim = weights[-1].shape[0]

    tile_n = _pick_tile(S, B)
    n_tiles = _cdiv(S, tile_n)       # partial last block is clipped by Pallas
    max_ch = max([C_in] + [w.shape[0] for w in weights])
    sub = _pick_subblock(tile_n, max_ch)
    n_sub = tile_n // sub

    in_specs = [pl.BlockSpec((None, C_in, tile_n), lambda b, i: (b, 0, i))]
    operands = [x3.astype(act_dtype)]
    for w, bias in zip(weights, biases):
        # Constant block index => resident in VMEM, no per-step re-DMA.
        in_specs.append(pl.BlockSpec(w.shape, lambda b, i: (0, 0)))
        in_specs.append(pl.BlockSpec(bias.shape, lambda b, i: (0, 0)))
        operands.append(w.astype(act_dtype))
        operands.append(bias.astype(jnp.float32))

    in_bytes = jnp.dtype(act_dtype).itemsize
    out_bytes = jnp.dtype(out_dtype).itemsize
    n_pix = B * S
    flops = int(2 * n_pix * sum(w.shape[0] * w.shape[1] for w in weights))
    transcendentals = int(n_pix * sum(w.shape[0] for w in weights[:-1]))
    bytes_accessed = int(
        n_pix * (C_in * in_bytes + out_dim * out_bytes)
        + sum(w.size * in_bytes + b.size * 4 for w, b in zip(weights, biases)))

    # VMEM footprint (double-buffered in/out slabs) stays ~1-3 MiB even at the
    # 64K-lane tile cap, well under the 32 MiB default scoped limit on every
    # generation, so no explicit vmem_limit_bytes is needed.
    out = pl.pallas_call(
        functools.partial(_projector_kernel, n_layers, sub, n_sub),
        out_shape=jax.ShapeDtypeStruct((B, out_dim, S), out_dtype),
        grid_spec=pltpu.PrefetchScalarGridSpec(
            num_scalar_prefetch=0,
            grid=(B, n_tiles),
            in_specs=in_specs,
            out_specs=pl.BlockSpec((None, out_dim, tile_n), lambda b, i: (b, 0, i)),
        ),
        compiler_params=pltpu.CompilerParams(
            # Every grid point is independent -> shard across v7x's 2 TensorCores.
            dimension_semantics=("parallel", "parallel"),
        ),
        cost_estimate=pl.CostEstimate(
            flops=flops,
            transcendentals=transcendentals,
            bytes_accessed=bytes_accessed,
        ),
    )(*operands)
    return out


# ----------------------------------------------------------------------------
# UniversalProjector in JAX (parameter glue) + Pallas hot path.
# ----------------------------------------------------------------------------
class UniversalProjectorPallas:
    def __init__(self, variables, hidden_dimension=None, n_hidden_layers=0,
                 out_dimension=3, key=None, act_dtype=jnp.bfloat16):
        self.variables = list(variables)
        self.n_hidden_layers = n_hidden_layers
        self.act_dtype = act_dtype
        hidden_dimension = hidden_dimension if n_hidden_layers > 0 else out_dimension
        self.channel_map = {v: i for i, v in enumerate(self.variables)}

        if key is None:
            key = jax.random.PRNGKey(0)

        # first conv: len(variables) -> hidden ; (n_hidden_layers-1) hidden convs ;
        # last conv: hidden -> out_dimension.  SiLU after every conv but the last.
        dims = [len(self.variables)]
        if n_hidden_layers > 0:
            dims += [hidden_dimension] * n_hidden_layers + [out_dimension]
        else:
            dims += [out_dimension]

        # Weights stored as (C_out, C_in)  == PyTorch OIHW with the 1x1 squeezed.
        self.weights = []
        self.biases = []   # (C_out, 1)
        for li in range(len(dims) - 1):
            c_in, c_out = dims[li], dims[li + 1]
            key, kw, kb = jax.random.split(key, 3)
            bound = 1.0 / (float(c_in) ** 0.5)
            w = jax.random.uniform(kw, (c_out, c_in), jnp.float32, -bound, bound)
            b = jax.random.uniform(kb, (c_out, 1), jnp.float32, -bound, bound)
            self.weights.append(w)
            self.biases.append(b)

    def get_var_ids(self, variables):
        return jnp.asarray([self.channel_map[v] for v in variables], dtype=jnp.int32)

    def __call__(self, x, variables):
        # x: (B, C_sel, T, H, W) float32, channels ordered as `variables`
        B, C_sel, T, H, W = x.shape
        var_ids = self.get_var_ids(tuple(variables))

        # Input-channel selection of the first conv weight:
        # OIHW weight[:, var_ids, 0, 0]  ==  (C_out, C_sel) column gather here.
        w_first = self.weights[0][:, var_ids]
        weights = [w_first] + self.weights[1:]
        biases = list(self.biases)

        # Native channel-major layout: reshape only (free), no transpose, no pad.
        x3 = x.reshape(B, C_sel, T * H * W)
        out3 = _run_projector(x3, weights, biases,
                              act_dtype=self.act_dtype, out_dtype=jnp.float32)
        out = out3.reshape(B, out3.shape[1], T, H, W)         # (B, out_dim, T, H, W)
        return out, var_ids


# ----------------------------------------------------------------------------
# Plain-JAX f32 reference (verification only).
# ----------------------------------------------------------------------------
def _reference_forward(x, weights, biases, var_ids):
    B, C_sel, T, H, W = x.shape
    h = x.reshape(B, C_sel, -1)
    w_list = [weights[0][:, var_ids]] + list(weights[1:])
    for i, (w, b) in enumerate(zip(w_list, biases)):
        h = jnp.einsum("oc,bcs->bos", w, h) + b[None, :, :]
        if i < len(w_list) - 1:
            h = h * (1.0 / (1.0 + jnp.exp(-h)))   # SiLU
    return h.reshape(B, h.shape[1], T, H, W)


if __name__ == "__main__":
    key = jax.random.PRNGKey(0)

    # Module config: 6 known variables, forward uses a subset/reorder of 4.
    all_variables = ["u", "v", "w", "t", "q", "p"]
    fwd_variables = ["t", "u", "q", "v"]
    hidden_dimension = 32
    n_hidden_layers = 2
    out_dimension = 3

    module = UniversalProjectorPallas(
        all_variables,
        hidden_dimension=hidden_dimension,
        n_hidden_layers=n_hidden_layers,
        out_dimension=out_dimension,
        key=jax.random.PRNGKey(42),
    )

    # Input video: (B, C_sel, T, H, W)
    B, T, H, W = 2, 4, 16, 16
    C_sel = len(fwd_variables)
    key, kx = jax.random.split(key)
    x = jax.random.normal(kx, (B, C_sel, T, H, W), dtype=jnp.float32)

    out, var_ids = module(x, fwd_variables)
    out = jax.block_until_ready(out)

    assert out.shape == (B, out_dimension, T, H, W), out.shape
    assert var_ids.shape == (C_sel,)

    ref = _reference_forward(x, module.weights, module.biases,
                             module.get_var_ids(tuple(fwd_variables)))
    ref = jax.block_until_ready(ref)
    max_err = float(jnp.max(jnp.abs(out - ref)))
    # Tolerance accounts for bf16 activation I/O and EUP approx reciprocal
    # (f32 MXU accumulation is kept); observed error is ~1e-3 level.
    assert jnp.allclose(out, ref, atol=2e-2, rtol=2e-2), max_err

    print("KERNEL_OK")
</pallas_src>

<mosaic_0001>
module attributes {stable_mosaic.version = 11 : i64} {
  func.func @_projector_kernel(%arg0: i32, %arg1: i32, %arg2: memref<1x4x256xbf16, #tpu.memory_space<vmem>>, %arg3: memref<32x4xbf16, #tpu.memory_space<vmem>>, %arg4: memref<32x1xf32, #tpu.memory_space<vmem>>, %arg5: memref<32x32xbf16, #tpu.memory_space<vmem>>, %arg6: memref<32x1xf32, #tpu.memory_space<vmem>>, %arg7: memref<3x32xbf16, #tpu.memory_space<vmem>>, %arg8: memref<3x1xf32, #tpu.memory_space<vmem>>, %arg9: memref<1x3x256xf32, #tpu.memory_space<vmem>>) attributes {dimension_semantics = [#tpu.dimension_semantics<parallel>, #tpu.dimension_semantics<parallel>], iteration_bounds = array<i64: 2, 4>, scalar_prefetch = 0 : i64, scratch_operands = 0 : i64, tpu.core_type = #tpu.core_type<tc>, window_params = [{transform_indices = @transform_0, window_bounds = array<i64: 1, 4, 256>}, {pipeline_mode = #tpu.pipeline_mode<synchronous>, transform_indices = @transform_1, window_bounds = array<i64: 32, 4>}, {pipeline_mode = #tpu.pipeline_mode<synchronous>, transform_indices = @transform_2, window_bounds = array<i64: 32, 1>}, {pipeline_mode = #tpu.pipeline_mode<synchronous>, transform_indices = @transform_3, window_bounds = array<i64: 32, 32>}, {pipeline_mode = #tpu.pipeline_mode<synchronous>, transform_indices = @transform_4, window_bounds = array<i64: 32, 1>}, {pipeline_mode = #tpu.pipeline_mode<synchronous>, transform_indices = @transform_5, window_bounds = array<i64: 3, 32>}, {pipeline_mode = #tpu.pipeline_mode<synchronous>, transform_indices = @transform_6, window_bounds = array<i64: 3, 1>}, {transform_indices = @transform_7, window_bounds = array<i64: 1, 3, 256>}]} {
    %c0 = arith.constant 0 : index
    %c0_0 = arith.constant 0 : index
    %0 = vector.load %arg3[%c0, %c0_0] : memref<32x4xbf16, #tpu.memory_space<vmem>>, vector<32x4xbf16>
    %c0_1 = arith.constant 0 : index
    %c0_2 = arith.constant 0 : index
    %1 = vector.load %arg5[%c0_1, %c0_2] : memref<32x32xbf16, #tpu.memory_space<vmem>>, vector<32x32xbf16>
    %c0_3 = arith.constant 0 : index
    %c0_4 = arith.constant 0 : index
    %2 = vector.load %arg7[%c0_3, %c0_4] : memref<3x32xbf16, #tpu.memory_space<vmem>>, vector<3x32xbf16>
    %c0_5 = arith.constant 0 : index
    %c0_6 = arith.constant 0 : index
    %3 = vector.load %arg4[%c0_5, %c0_6] : memref<32x1xf32, #tpu.memory_space<vmem>>, vector<32x1xf32>
    %c0_7 = arith.constant 0 : index
    %c0_8 = arith.constant 0 : index
    %4 = vector.load %arg6[%c0_7, %c0_8] : memref<32x1xf32, #tpu.memory_space<vmem>>, vector<32x1xf32>
    %c0_9 = arith.constant 0 : index
    %c0_10 = arith.constant 0 : index
    %5 = vector.load %arg8[%c0_9, %c0_10] : memref<3x1xf32, #tpu.memory_space<vmem>>, vector<3x1xf32>
    %c0_i32 = arith.constant 0 : i32
    %c256_i32 = arith.constant 256 : i32
    %6 = arith.muli %c0_i32, %c256_i32 : i32
    %7 = tpu.assume_multiple %6, 256 : i32
    %c0_11 = arith.constant 0 : index
    %c0_12 = arith.constant 0 : index
    %8 = arith.index_cast %7 : i32 to index
    %9 = vector.load %arg2[%c0_11, %c0_12, %8] : memref<1x4x256xbf16, #tpu.memory_space<vmem>>, vector<1x4x256xbf16>
    %10 = vector.shape_cast %9 : vector<1x4x256xbf16> to vector<4x256xbf16>
    %cst = arith.constant dense<0.000000e+00> : vector<32x256xf32>
    %11 = tpu.matmul %0, %10, %cst {dimension_numbers = #tpu.dot_dimension_numbers<[1], [0], [0], [1], [0, 0, 1, 1], [], []>} : vector<32x4xbf16>, vector<4x256xbf16>, vector<32x256xf32> -> vector<32x256xf32>
    %12 = vector.broadcast %3 : vector<32x1xf32> to vector<32x256xf32>
    %13 = arith.addf %11, %12 : vector<32x256xf32>
    %cst_13 = arith.constant 0.000000e+00 : f32
    %14 = vector.broadcast %cst_13 : f32 to vector<32x256xf32>
    %15 = arith.subf %14, %13 : vector<32x256xf32>
    %16 = math.exp %15 : vector<32x256xf32>
    %cst_14 = arith.constant 1.000000e+00 : f32
    %17 = vector.broadcast %cst_14 : f32 to vector<32x256xf32>
    %18 = arith.addf %17, %16 : vector<32x256xf32>
    %19 = tpu.reciprocal %18 {approx = true} : vector<32x256xf32> -> vector<32x256xf32>
    %20 = arith.mulf %13, %19 : vector<32x256xf32>
    %21 = arith.truncf %20 : vector<32x256xf32> to vector<32x256xbf16>
    %cst_15 = arith.constant dense<0.000000e+00> : vector<32x256xf32>
    %22 = tpu.matmul %1, %21, %cst_15 {dimension_numbers = #tpu.dot_dimension_numbers<[1], [0], [0], [1], [0, 0, 1, 1], [], []>} : vector<32x32xbf16>, vector<32x256xbf16>, vector<32x256xf32> -> vector<32x256xf32>
    %23 = vector.broadcast %4 : vector<32x1xf32> to vector<32x256xf32>
    %24 = arith.addf %22, %23 : vector<32x256xf32>
    %cst_16 = arith.constant 0.000000e+00 : f32
    %25 = vector.broadcast %cst_16 : f32 to vector<32x256xf32>
    %26 = arith.subf %25, %24 : vector<32x256xf32>
    %27 = math.exp %26 : vector<32x256xf32>
    %cst_17 = arith.constant 1.000000e+00 : f32
    %28 = vector.broadcast %cst_17 : f32 to vector<32x256xf32>
    %29 = arith.addf %28, %27 : vector<32x256xf32>
    %30 = tpu.reciprocal %29 {approx = true} : vector<32x256xf32> -> vector<32x256xf32>
    %31 = arith.mulf %24, %30 : vector<32x256xf32>
    %32 = arith.truncf %31 : vector<32x256xf32> to vector<32x256xbf16>
    %cst_18 = arith.constant dense<0.000000e+00> : vector<3x256xf32>
    %33 = tpu.matmul %2, %32, %cst_18 {dimension_numbers = #tpu.dot_dimension_numbers<[1], [0], [0], [1], [0, 0, 1, 1], [], []>} : vector<3x32xbf16>, vector<32x256xbf16>, vector<3x256xf32> -> vector<3x256xf32>
    %34 = vector.broadcast %5 : vector<3x1xf32> to vector<3x256xf32>
    %35 = arith.addf %33, %34 : vector<3x256xf32>
    %c0_19 = arith.constant 0 : index
    %c0_20 = arith.constant 0 : index
    %36 = arith.index_cast %7 : i32 to index
    %37 = vector.load %arg9[%c0_19, %c0_20, %36] : memref<1x3x256xf32, #tpu.memory_space<vmem>>, vector<1x3x256xf32>
    %38 = vector.shape_cast %37 : vector<1x3x256xf32> to vector<3x256xf32>
    %39 = vector.shape_cast %35 : vector<3x256xf32> to vector<1x3x256xf32>
    tpu.vector_store %arg9[%c0_19, %c0_20, %36], %39 {strides = array<i32>} : memref<1x3x256xf32, #tpu.memory_space<vmem>>, vector<1x3x256xf32>,
    %c1_i32 = arith.constant 1 : i32
    return
  }
  func.func @transform_0(%arg0: i32, %arg1: i32) -> (i32, i32, i32) {
    %c0_i32 = arith.constant 0 : i32
    %c0_i32_0 = arith.constant 0 : i32
    return %arg0, %c0_i32, %arg1 : i32, i32, i32
  }
  func.func @transform_1(%arg0: i32, %arg1: i32) -> (i32, i32) {
    %c0_i32 = arith.constant 0 : i32
    %c0_i32_0 = arith.constant 0 : i32
    %c0_i32_1 = arith.constant 0 : i32
    return %c0_i32, %c0_i32_0 : i32, i32
  }
  func.func @transform_2(%arg0: i32, %arg1: i32) -> (i32, i32) {
    %c0_i32 = arith.constant 0 : i32
    %c0_i32_0 = arith.constant 0 : i32
    %c0_i32_1 = arith.constant 0 : i32
    return %c0_i32, %c0_i32_0 : i32, i32
  }
  func.func @transform_3(%arg0: i32, %arg1: i32) -> (i32, i32) {
    %c0_i32 = arith.constant 0 : i32
    %c0_i32_0 = arith.constant 0 : i32
    %c0_i32_1 = arith.constant 0 : i32
    return %c0_i32, %c0_i32_0 : i32, i32
  }
  func.func @transform_4(%arg0: i32, %arg1: i32) -> (i32, i32) {
    %c0_i32 = arith.constant 0 : i32
    %c0_i32_0 = arith.constant 0 : i32
    %c0_i32_1 = arith.constant 0 : i32
    return %c0_i32, %c0_i32_0 : i32, i32
  }
  func.func @transform_5(%arg0: i32, %arg1: i32) -> (i32, i32) {
    %c0_i32 = arith.constant 0 : i32
    %c0_i32_0 = arith.constant 0 : i32
    %c0_i32_1 = arith.constant 0 : i32
    return %c0_i32, %c0_i32_0 : i32, i32
  }
  func.func @transform_6(%arg0: i32, %arg1: i32) -> (i32, i32) {
    %c0_i32 = arith.constant 0 : i32
    %c0_i32_0 = arith.constant 0 : i32
    %c0_i32_1 = arith.constant 0 : i32
    return %c0_i32, %c0_i32_0 : i32, i32
  }
  func.func @transform_7(%arg0: i32, %arg1: i32) -> (i32, i32, i32) {
    %c0_i32 = arith.constant 0 : i32
    %c0_i32_0 = arith.constant 0 : i32
    return %arg0, %c0_i32, %arg1 : i32, i32, i32
  }
}

</mosaic_0001>

<llo_original>
// kernel: tpu_custom_call.1
$region0: #{tpu_custom_call.1}
  #allocation0 [shape = 'u32[]', space=smem, size = 0x4, offset = 0x4, fixed_abs, tag = 'smem constant byte address 0x4 - core index']
  #allocation1 [shape = 'u32[72,128]{1,0:T(1,128)}', space=vmem, size = 0x9000, scoped, tag = 'internal scratch']
  %s0 = inlined_call_operand.vmem [shape: bf16[2,4,1024], index: 0, kind: input, shape index: {}]
  %s1 = inlined_call_operand.vmem [shape: bf16[32,4], index: 1, kind: input, shape index: {}]
  %s2 = inlined_call_operand.vmem [shape: f32[32,1], index: 2, kind: input, shape index: {}]
  %s3 = inlined_call_operand.vmem [shape: bf16[32,32], index: 3, kind: input, shape index: {}]
  %s4 = inlined_call_operand.vmem [shape: f32[32,1], index: 4, kind: input, shape index: {}]
  %s5 = inlined_call_operand.vmem [shape: bf16[3,32], index: 5, kind: input, shape index: {}]
  %s6 = inlined_call_operand.vmem [shape: f32[3,1], index: 6, kind: input, shape index: {}]
  %s7 = inlined_call_operand.vmem [shape: f32[2,3,1024], index: 7, kind: output, shape index: {}]
  %s8 = sld [smem:[#allocation0]]
  $region61: #{tpu_custom_call.1} parent=0
    _
  %s10 = ssub.s32 1, %s8
  %s11 = scalar_select 0, %s10, %s8
  loop: start=0, step=1, limit=10
  $region2: #{tpu_custom_call.1} parent=0 // loop_pre_header
    _
  $region3: #{tpu_custom_call.1} parent=0 // loop_header
    %s13 = sphi 0, %s17
    %p14 = scmp.ge.s32.totalorder %s13, 10
    %s20 = sphi 0, %s32
    %s21 = sphi 0, %s28
    %s22 = sphi 0, %s20
    %s23 = sphi 0, %s21
    %s24 = sphi 0, %s22
    %s25 = sphi 0, %s23
    %s37 = sphi 0, %s39
    %s40 = sphi 0, %s37
    %s41 = sphi 0, %s40
    %s57 = sphi 0, %s41
    %s61 = sphi 0, %s61
    %s63 = sphi 0, %s61
    %s64 = sphi 0, %s63
    %s78 = sphi 0, %s64
    %s82 = sphi 0, %s82
    %s84 = sphi 0, %s82
    %s85 = sphi 0, %s84
    %s99 = sphi 0, %s85
    %s103 = sphi 0, %s103
    %s105 = sphi 0, %s103
    %s106 = sphi 0, %s105
    %s120 = sphi 0, %s106
    %s124 = sphi 0, %s124
    %s126 = sphi 0, %s124
    %s127 = sphi 0, %s126
    %s141 = sphi 0, %s127
    %s145 = sphi 0, %s145
    %s147 = sphi 0, %s145
    %s148 = sphi 0, %s147
    %s162 = sphi 0, %s148
    %s166 = sphi 0, %s166
    %s168 = sphi 0, %s166
    %s169 = sphi 0, %s168
    %s183 = sphi 0, %s169
    %s191 = sphi 0, %s193
    %s194 = sphi 0, %s191
    %s195 = sphi 0, %s194
    %s211 = sphi 0, %s195
  $region4: #{tpu_custom_call.1} parent=0 // loop_header_branch
    %16 = sbr.rel (%p14) target = $region8
  $region5: #{tpu_custom_call.1} parent=0 // loop_body
    %s18 = ssub.s32 %s13, 1
    %s19 = ssub.s32 %s13, 2
    %s26 = sadd.s32 1, %s21
    %p27 = scmp.ge.s32.totalorder %s26, 4
    %s28 = scalar_select %p27, 0, %s26
    %s29 = sadd.s32 1, %s20
    %s30 = scalar_select %p27, %s29, %s20
    %p31 = scmp.ge.s32.totalorder %s30, 2
    %s32 = scalar_select %p31, 0, %s30
    %s33 = ssub.s32 %s20, %s32
    %s34 = ssub.s32 %s21, %s28
    %s35 = sor.u32 %s33, %s34
    %p36 = scmp.eq.s32.totalorder %s35, 0
    %s38 = sadd.s32 %s37, 1
    %s39 = scalar_select %p36, %s37, %s38
    %p42 = pneg %p36
    %p43 = scmp.eq.s32.totalorder %s13, 7
    %p44 = por %p42, %p43
    %p45 = scmp.ne.s32.totalorder %s37, %s40
    %p46 = scmp.eq.s32.totalorder %s13, 0
    %p47 = por %p45, %p46
    %p48 = scmp.ne.s32.totalorder %s37, %s40
    %p49 = scmp.eq.s32.totalorder %s18, 7
    %p50 = por %p48, %p49
    %p51 = scmp.ne.s32.totalorder %s40, %s41
    %p52 = scmp.eq.s32.totalorder %s18, 0
    %p53 = por %p51, %p52
    %p54 = scmp.ne.s32.totalorder %s40, %s41
    %p55 = scmp.eq.s32.totalorder %s19, 7
    %p56 = por %p54, %p55
    %p58 = scmp.ne.s32.totalorder %s41, %s57
    %p59 = scmp.eq.s32.totalorder %s19, 0
    %p60 = por %p58, %p59
    %s62 = sadd.s32 %s61, 1
    %p65 = scmp.eq.s32.totalorder %s13, 7
    %p66 = scmp.ne.s32.totalorder %s61, %s63
    %p67 = scmp.eq.s32.totalorder %s13, 0
    %p68 = por %p66, %p67
    %p69 = scmp.ne.s32.totalorder %s61, %s63
    %p70 = scmp.eq.s32.totalorder %s18, 7
    %p71 = por %p69, %p70
    %p72 = scmp.ne.s32.totalorder %s63, %s64
    %p73 = scmp.eq.s32.totalorder %s18, 0
    %p74 = por %p72, %p73
    %p75 = scmp.ne.s32.totalorder %s63, %s64
    %p76 = scmp.eq.s32.totalorder %s19, 7
    %p77 = por %p75, %p76
    %p79 = scmp.ne.s32.totalorder %s64, %s78
    %p80 = scmp.eq.s32.totalorder %s19, 0
    %p81 = por %p79, %p80
    %s83 = sadd.s32 %s82, 1
    %p86 = scmp.eq.s32.totalorder %s13, 7
    %p87 = scmp.ne.s32.totalorder %s82, %s84
    %p88 = scmp.eq.s32.totalorder %s13, 0
    %p89 = por %p87, %p88
    %p90 = scmp.ne.s32.totalorder %s82, %s84
    %p91 = scmp.eq.s32.totalorder %s18, 7
    %p92 = por %p90, %p91
    %p93 = scmp.ne.s32.totalorder %s84, %s85
    %p94 = scmp.eq.s32.totalorder %s18, 0
    %p95 = por %p93, %p94
    %p96 = scmp.ne.s32.totalorder %s84, %s85
    %p97 = scmp.eq.s32.totalorder %s19, 7
    %p98 = por %p96, %p97
    %p100 = scmp.ne.s32.totalorder %s85, %s99
    %p101 = scmp.eq.s32.totalorder %s19, 0
    %p102 = por %p100, %p101
    %s104 = sadd.s32 %s103, 1
    %p107 = scmp.eq.s32.totalorder %s13, 7
    %p108 = scmp.ne.s32.totalorder %s103, %s105
    %p109 = scmp.eq.s32.totalorder %s13, 0
    %p110 = por %p108, %p109
    %p111 = scmp.ne.s32.totalorder %s103, %s105
    %p112 = scmp.eq.s32.totalorder %s18, 7
    %p113 = por %p111, %p112
    %p114 = scmp.ne.s32.totalorder %s105, %s106
    %p115 = scmp.eq.s32.totalorder %s18, 0
    %p116 = por %p114, %p115
    %p117 = scmp.ne.s32.totalorder %s105, %s106
    %p118 = scmp.eq.s32.totalorder %s19, 7
    %p119 = por %p117, %p118
    %p121 = scmp.ne.s32.totalorder %s106, %s120
    %p122 = scmp.eq.s32.totalorder %s19, 0
    %p123 = por %p121, %p122
    %s125 = sadd.s32 %s124, 1
    %p128 = scmp.eq.s32.totalorder %s13, 7
    %p129 = scmp.ne.s32.totalorder %s124, %s126
    %p130 = scmp.eq.s32.totalorder %s13, 0
    %p131 = por %p129, %p130
    %p132 = scmp.ne.s32.totalorder %s124, %s126
    %p133 = scmp.eq.s32.totalorder %s18, 7
    %p134 = por %p132, %p133
    %p135 = scmp.ne.s32.totalorder %s126, %s127
    %p136 = scmp.eq.s32.totalorder %s18, 0
    %p137 = por %p135, %p136
    %p138 = scmp.ne.s32.totalorder %s126, %s127
    %p139 = scmp.eq.s32.totalorder %s19, 7
    %p140 = por %p138, %p139
    %p142 = scmp.ne.s32.totalorder %s127, %s141
    %p143 = scmp.eq.s32.totalorder %s19, 0
    %p144 = por %p142, %p143
    %s146 = sadd.s32 %s145, 1
    %p149 = scmp.eq.s32.totalorder %s13, 7
    %p150 = scmp.ne.s32.totalorder %s145, %s147
    %p151 = scmp.eq.s32.totalorder %s13, 0
    %p152 = por %p150, %p151
    %p153 = scmp.ne.s32.totalorder %s145, %s147
    %p154 = scmp.eq.s32.totalorder %s18, 7
    %p155 = por %p153, %p154
    %p156 = scmp.ne.s32.totalorder %s147, %s148
    %p157 = scmp.eq.s32.totalorder %s18, 0
    %p158 = por %p156, %p157
    %p159 = scmp.ne.s32.totalorder %s147, %s148
    %p160 = scmp.eq.s32.totalorder %s19, 7
    %p161 = por %p159, %p160
    %p163 = scmp.ne.s32.totalorder %s148, %s162
    %p164 = scmp.eq.s32.totalorder %s19, 0
    %p165 = por %p163, %p164
    %s167 = sadd.s32 %s166, 1
    %p170 = scmp.eq.s32.totalorder %s13, 7
    %p171 = scmp.ne.s32.totalorder %s166, %s168
    %p172 = scmp.eq.s32.totalorder %s13, 0
    %p173 = por %p171, %p172
    %p174 = scmp.ne.s32.totalorder %s166, %s168
    %p175 = scmp.eq.s32.totalorder %s18, 7
    %p176 = por %p174, %p175
    %p177 = scmp.ne.s32.totalorder %s168, %s169
    %p178 = scmp.eq.s32.totalorder %s18, 0
    %p179 = por %p177, %p178
    %p180 = scmp.ne.s32.totalorder %s168, %s169
    %p181 = scmp.eq.s32.totalorder %s19, 7
    %p182 = por %p180, %p181
    %p184 = scmp.ne.s32.totalorder %s169, %s183
    %p185 = scmp.eq.s32.totalorder %s19, 0
    %p186 = por %p184, %p185
    %s187 = ssub.s32 %s20, %s32
    %s188 = ssub.s32 %s21, %s28
    %s189 = sor.u32 %s187, %s188
    %p190 = scmp.eq.s32.totalorder %s189, 0
    %s192 = sadd.s32 %s191, 1
    %s193 = scalar_select %p190, %s191, %s192
    %p196 = pneg %p190
    %p197 = scmp.eq.s32.totalorder %s13, 7
    %p198 = por %p196, %p197
    %p199 = scmp.ne.s32.totalorder %s191, %s194
    %p200 = scmp.eq.s32.totalorder %s13, 0
    %p201 = por %p199, %p200
    %p202 = scmp.ne.s32.totalorder %s191, %s194
    %p203 = scmp.eq.s32.totalorder %s18, 7
    %p204 = por %p202, %p203
    %p205 = scmp.ne.s32.totalorder %s194, %s195
    %p206 = scmp.eq.s32.totalorder %s18, 0
    %p207 = por %p205, %p206
    %p208 = scmp.ne.s32.totalorder %s194, %s195
    %p209 = scmp.eq.s32.totalorder %s19, 7
    %p210 = por %p208, %p209
    %p212 = scmp.ne.s32.totalorder %s195, %s211
    %p213 = scmp.eq.s32.totalorder %s19, 0
    %p214 = por %p212, %p213
    %p215 = scmp.le.s32.totalorder 1, %s13
    %p216 = scmp.lt.s32.totalorder %s13, 9
    %p217 = pnand %p215, %p216
    %p218 = pneg %p217
    // Predicated region
    $region9: #{tpu_custom_call.1} parent=5 // pred_check
      _
    $region10: #{tpu_custom_call.1} parent=5 // pred_check_branch
      %220 = sbr.rel (%p217) target = $region12
    $region11: #{tpu_custom_call.1} parent=5 // pred_region
      %s221 = ssub.s32 %s13, 1
      // Predicated region
      $region13: #{tpu_custom_call.1} parent=11 // pred_check
        %p222 = pneg %p74
      $region14: #{tpu_custom_call.1} parent=11 // pred_check_branch
        %224 = sbr.rel (%p222) target = $region16
      $region15: #{tpu_custom_call.1} parent=11 // pred_region
        _
      $region16: #{tpu_custom_call.1} parent=11 // pred_fallthru
        _
      // Predicated region
      $region17: #{tpu_custom_call.1} parent=11 // pred_check
        %p225 = pneg %p95
      $region18: #{tpu_custom_call.1} parent=11 // pred_check_branch
        %227 = sbr.rel (%p225) target = $region20
      $region19: #{tpu_custom_call.1} parent=11 // pred_region
        _
      $region20: #{tpu_custom_call.1} parent=11 // pred_fallthru
        _
      // Predicated region
      $region21: #{tpu_custom_call.1} parent=11 // pred_check
        %p228 = pneg %p116
      $region22: #{tpu_custom_call.1} parent=11 // pred_check_branch
        %230 = sbr.rel (%p228) target = $region24
      $region23: #{tpu_custom_call.1} parent=11 // pred_region
        _
      $region24: #{tpu_custom_call.1} parent=11 // pred_fallthru
        _
      // Predicated region
      $region25: #{tpu_custom_call.1} parent=11 // pred_check
        %p231 = pneg %p137
      $region26: #{tpu_custom_call.1} parent=11 // pred_check_branch
        %233 = sbr.rel (%p231) target = $region28
      $region27: #{tpu_custom_call.1} parent=11 // pred_region
        _
      $region28: #{tpu_custom_call.1} parent=11 // pred_fallthru
        _
      // Predicated region
      $region29: #{tpu_custom_call.1} parent=11 // pred_check
        %p234 = pneg %p158
      $region30: #{tpu_custom_call.1} parent=11 // pred_check_branch
        %236 = sbr.rel (%p234) target = $region32
      $region31: #{tpu_custom_call.1} parent=11 // pred_region
        _
      $region32: #{tpu_custom_call.1} parent=11 // pred_fallthru
        _
      // Predicated region
      $region33: #{tpu_custom_call.1} parent=11 // pred_check
        %p237 = pneg %p179
      $region34: #{tpu_custom_call.1} parent=11 // pred_check_branch
        %239 = sbr.rel (%p237) target = $region36
      $region35: #{tpu_custom_call.1} parent=11 // pred_region
        _
      $region36: #{tpu_custom_call.1} parent=11 // pred_fallthru
        _
    $region12: #{tpu_custom_call.1} parent=5 // pred_fallthru
      _
    %p240 = scmp.lt.s32.totalorder %s13, 8
    // Predicated region
    $region37: #{tpu_custom_call.1} parent=5 // pred_check
      %p241 = pneg %p240
    $region38: #{tpu_custom_call.1} parent=5 // pred_check_branch
      %243 = sbr.rel (%p241) target = $region40
    $region39: #{tpu_custom_call.1} parent=5 // pred_region
      // Predicated region
      $region41: #{tpu_custom_call.1} parent=39 // pred_check
        %p244 = pneg %p47
      $region42: #{tpu_custom_call.1} parent=39 // pred_check_branch
        %246 = sbr.rel (%p244) target = $region44
      $region43: #{tpu_custom_call.1} parent=39 // pred_region
        %s247 = smul.u32 2, %s21
        %p248 = scmp.lt.s32.totalorder %s20, 1
        %s249 = scalar_select %p248, %s20, 1
        %p250 = scmp.lt.s32.totalorder %s247, 7
        %s251 = scalar_select %p250, %s247, 7
        %s252 = smul.addr %s249, 8
        %s253 = sadd.s32 %s251, %s252
        %s254 = smul.addr %s253, 2
        %s255 = scalar_lea.vmem %s0, %s254
        %s256 = smul.u32 2, %s21
      $region44: #{tpu_custom_call.1} parent=39 // pred_fallthru
        _
    $region40: #{tpu_custom_call.1} parent=5 // pred_fallthru
      _
    %p257 = scmp.le.s32.totalorder 1, %s13
    %p258 = scmp.lt.s32.totalorder %s13, 9
    %p259 = pnand %p257, %p258
    %p260 = pneg %p259
    // Predicated region
    $region45: #{tpu_custom_call.1} parent=5 // pred_check
      _
    $region46: #{tpu_custom_call.1} parent=5 // pred_check_branch
      %262 = sbr.rel (%p259) target = $region48
    $region47: #{tpu_custom_call.1} parent=5 // pred_region
      %s263 = ssub.s32 %s13, 1
      %s264 = smul.u32 2, %s23
      %p265 = scmp.lt.s32.totalorder %s22, 1
      %s266 = scalar_select %p265, %s22, 1
      %p267 = scmp.lt.s32.totalorder %s264, 7
      %s268 = scalar_select %p267, %s264, 7
      %s269 = smul.addr %s266, 8
      %s270 = sadd.s32 %s268, %s269
      %s271 = smul.addr %s270, 2
      %s272 = scalar_lea.vmem %s0, %s271
      %p273 = pneg %p53
      %p274 = pneg %p50
      %p275 = pneg %p74
      %p276 = pneg %p71
      %p277 = pneg %p95
      %p278 = pneg %p92
      %p279 = pneg %p116
      %p280 = pneg %p113
      %p281 = pneg %p137
      %p282 = pneg %p134
      %p283 = pneg %p158
      %p284 = pneg %p155
      %p285 = pneg %p179
      %p286 = pneg %p176
      %p287 = pneg %p207
      %p288 = pneg %p204
      %s289 = smul.u32 2, %s23
      %p290 = scmp.lt.s32.totalorder %s22, 1
      %s291 = scalar_select %p290, %s22, 1
      %p292 = scmp.lt.s32.totalorder %s289, 7
      %s293 = scalar_select %p292, %s289, 7
      %s294 = smul.addr %s291, 8
      %s295 = sadd.s32 %s293, %s294
      %s296 = smul.addr %s295, 4
      %s297 = scalar_lea.vmem %s7, %s296
      %s298 = smul.u32 2, %s23
      %p299 = scmp.lt.s32.totalorder %s22, 1
      %s300 = scalar_select %p299, %s22, 1
      %p301 = scmp.lt.s32.totalorder %s298, 7
      %s302 = scalar_select %p301, %s298, 7
      %s303 = smul.addr %s300, 8
      %s304 = sadd.s32 %s302, %s303
      %s305 = smul.addr %s304, 2
      %s306 = scalar_lea.vmem %s0, %s305
      %s307 = smul.u32 2, %s23
      %s308 = smul.u32 2, %s23
      %p309 = scmp.lt.s32.totalorder %s22, 1
      %s310 = scalar_select %p309, %s22, 1
      %p311 = scmp.lt.s32.totalorder %s308, 7
      %s312 = scalar_select %p311, %s308, 7
      %s313 = smul.addr %s310, 8
      %s314 = sadd.s32 %s312, %s313
      %s315 = smul.addr %s314, 4
      %s316 = scalar_lea.vmem %s7, %s315
      %s317 = smul.u32 2, %s23
      %v319 = vld [vmem:[%s1] sm:$0xf]
      %v320 = vld [vmem:[%s1 + $0x4] sm:$0xf]
      %v321 = vld [vmem:[%s1 + $0x8] sm:$0xf]
      %v322 = vld [vmem:[%s1 + $0xc] sm:$0xf]
      %v323 = vld [vmem:[%s3] sm:$0xf]
      %v324 = vld [vmem:[%s3 + $0x4] sm:$0xf]
      %v325 = vld [vmem:[%s3 + $0x8] sm:$0xf]
      %v326 = vld [vmem:[%s3 + $0xc] sm:$0xf]
      %v327 = vld [vmem:[%s5] sm:$0x3]
      %v328 = vld [vmem:[%s2] sm:$0xff]
      %v329 = vld [vmem:[%s2 + $0x8] sm:$0xff]
      %v330 = vld [vmem:[%s2 + $0x10] sm:$0xff]
      %v331 = vld [vmem:[%s2 + $0x18] sm:$0xff]
      %v332 = vld [vmem:[%s4] sm:$0xff]
      %v333 = vld [vmem:[%s4 + $0x8] sm:$0xff]
      %v334 = vld [vmem:[%s4 + $0x10] sm:$0xff]
      %v335 = vld [vmem:[%s4 + $0x18] sm:$0xff]
      %v336 = vld [vmem:[%s6] sm:$0x7]
      %v337 = vld [vmem:[%s306] sm:$0xf]
      %339 = vset.pattern.permute.xlu0 0
      %340 = vperm.xlu0 %339, %v328
      %v341 = vpop.permute.xlu0 %340
      %344 = vset.pattern.permute.xlu0 0
      %345 = vperm.xlu0 %344, %v329
      %v346 = vpop.permute.xlu0 %345
      %349 = vset.pattern.permute.xlu0 0
      %350 = vperm.xlu0 %349, %v330
      %v351 = vpop.permute.xlu0 %350
      %354 = vset.pattern.permute.xlu0 0
      %355 = vperm.xlu0 %354, %v331
      %v356 = vpop.permute.xlu0 %355
      %v362 = vunpack.c.l.b16 %v319
      %v363 = vunpack.c.l.b16 %v320
      %v364 = vunpack.c.l.b16 %v321
      %v365 = vunpack.c.l.b16 %v322
      %v366 = vpack.c.b16 %v363, %v362
      %v367 = vpack.c.b16 %v365, %v364
      %369 = vst [vmem:[#allocation1] ss:$4 sm:$0xff] %v337
      %v370 = vld.sshfl [vmem:[#allocation1] sm:$0xff pattern:$0x73625140]
      %v371 = vld.sshfl [vmem:[#allocation1 + $0x8] sm:$0xff pattern:$0x73625140]
      %vm372 = vcmask 31744
      %v374 = vsel %vm372, %v366, 0
      %v377 = vsel %vm372, %v367, 0
      %vm379 = vcmask 1041408
      %v380 = vsel %vm379, %v370, 0
      %v382 = vsel %vm379, %v371, 0
      %384 = vmatpush.bf16.msra.mxu0 0
      %385 = vmatpush.bf16.msra.mxu0 0
      %386 = vmatpush.bf16.msra.mxu0 0
      %387 = vmatpush.bf16.msra.mxu0 0
      %388 = vmatpush.bf16.msra.mxu0 0
      %389 = vmatpush.bf16.msra.mxu0 0
      %390 = vmatpush.bf16.msra.mxu0 0
      %391 = vmatpush.bf16.msra.mxu0 %v380
      %392 = vmatmul.bf16.gmra.mxu0 %v374
      %v393 = vpop.f32.mrf.mxu0
      %v394 = vadd.f32 %v341, %v393
      %v395 = vpop.f32.mrf.mxu0
      %v396 = vadd.f32 %v346, %v395
      %397 = vmatmul.bf16.gmra.mxu0 %v377
      %v398 = vpop.f32.mrf.mxu0
      %v399 = vadd.f32 %v351, %v398
      %v400 = vpop.f32.mrf.mxu0
      %v401 = vadd.f32 %v356, %v400
      %402 = vdwg.mxu0
      %403 = vmatpush.bf16.msra.mxu0 0
      %404 = vmatpush.bf16.msra.mxu0 0
      %405 = vmatpush.bf16.msra.mxu0 0
      %406 = vmatpush.bf16.msra.mxu0 0
      %407 = vmatpush.bf16.msra.mxu0 0
      %408 = vmatpush.bf16.msra.mxu0 0
      %409 = vmatpush.bf16.msra.mxu0 0
      %410 = vmatpush.bf16.msra.mxu0 %v382
      %411 = vmatmul.bf16.gmra.mxu0 %v374
      %v412 = vpop.f32.mrf.mxu0
      %v413 = vadd.f32 %v341, %v412
      %v414 = vpop.f32.mrf.mxu0
      %v415 = vadd.f32 %v346, %v414
      %416 = vmatmul.bf16.gmra.mxu0 %v377
      %v417 = vpop.f32.mrf.mxu0
      %v418 = vadd.f32 %v351, %v417
      %v419 = vpop.f32.mrf.mxu0
      %v420 = vadd.f32 %v356, %v419
      %421 = vdwg.mxu0
      %v422 = vsub.f32 0.0, %v394
      %v423 = vsub.f32 0.0, %v413
      %v424 = vsub.f32 0.0, %v396
      %v425 = vsub.f32 0.0, %v415
      %v426 = vsub.f32 0.0, %v399
      %v427 = vsub.f32 0.0, %v418
      %v428 = vsub.f32 0.0, %v401
      %v429 = vsub.f32 0.0, %v420
      %v430 = vmul.f32 %v422, 1.442695
      %v431 = vpow.pop %v430
      %v432 = vmul.f32 %v423, 1.442695
      %v433 = vpow.pop %v432
      %v434 = vmul.f32 %v424, 1.442695
      %v435 = vpow.pop %v434
      %v436 = vmul.f32 %v425, 1.442695
      %v437 = vpow.pop %v436
      %v438 = vmul.f32 %v426, 1.442695
      %v439 = vpow.pop %v438
      %v440 = vmul.f32 %v427, 1.442695
      %v441 = vpow.pop %v440
      %v442 = vmul.f32 %v428, 1.442695
      %v443 = vpow.pop %v442
      %v444 = vmul.f32 %v429, 1.442695
      %v445 = vpow.pop %v444
      %v446 = vadd.f32 %v431, 1.0
      %v447 = vadd.f32 %v433, 1.0
      %v448 = vadd.f32 %v435, 1.0
      %v449 = vadd.f32 %v437, 1.0
      %v450 = vadd.f32 %v439, 1.0
      %v451 = vadd.f32 %v441, 1.0
      %v452 = vadd.f32 %v443, 1.0
      %v453 = vadd.f32 %v445, 1.0
      %v454 = vrcp.pop %v446
      %v455 = vrcp.pop %v447
      %v456 = vrcp.pop %v448
      %v457 = vrcp.pop %v449
      %v458 = vrcp.pop %v450
      %v459 = vrcp.pop %v451
      %v460 = vrcp.pop %v452
      %v461 = vrcp.pop %v453
      %v462 = vmul.f32 %v394, %v454
      %v463 = vmul.f32 %v413, %v455
      %v464 = vmul.f32 %v396, %v456
      %v465 = vmul.f32 %v415, %v457
      %v466 = vmul.f32 %v399, %v458
      %v467 = vmul.f32 %v418, %v459
      %v468 = vmul.f32 %v401, %v460
      %v469 = vmul.f32 %v420, %v461
      %v470 = vpack.c.bf16 %v464, %v462
      %v471 = vpack.c.bf16 %v465, %v463
      %v472 = vpack.c.bf16 %v468, %v466
      %v473 = vpack.c.bf16 %v469, %v467
      %475 = vset.pattern.permute.xlu0 0
      %476 = vperm.xlu0 %475, %v332
      %v477 = vpop.permute.xlu0 %476
      %480 = vset.pattern.permute.xlu0 0
      %481 = vperm.xlu0 %480, %v333
      %v482 = vpop.permute.xlu0 %481
      %485 = vset.pattern.permute.xlu0 0
      %486 = vperm.xlu0 %485, %v334
      %v487 = vpop.permute.xlu0 %486
      %490 = vset.pattern.permute.xlu0 0
      %491 = vperm.xlu0 %490, %v335
      %v492 = vpop.permute.xlu0 %491
      %v498 = vunpack.c.l.b16 %v323
      %v499 = vunpack.c.l.b16 %v324
      %v500 = vunpack.c.l.b16 %v325
      %v501 = vunpack.c.l.b16 %v326
      %v502 = vpack.c.b16 %v499, %v498
      %v503 = vpack.c.b16 %v501, %v500
      %vm504 = vcmask 261120
      %v506 = vsel %vm504, %v502, 0
      %v509 = vsel %vm504, %v503, 0
      %511 = vmatpush.bf16.msra.mxu0 0
      %512 = vmatpush.bf16.msra.mxu0 0
      %513 = vmatpush.bf16.msra.mxu0 0
      %514 = vmatpush.bf16.msra.mxu0 0
      %515 = vmatpush.bf16.msra.mxu0 0
      %516 = vmatpush.bf16.msra.mxu0 0
      %517 = vmatpush.bf16.msra.mxu0 %v472
      %518 = vmatpush.bf16.msra.mxu0 %v470
      %519 = vmatmul.bf16.gmra.mxu0 %v506
      %v520 = vpop.f32.mrf.mxu0
      %v521 = vadd.f32 %v477, %v520
      %v522 = vpop.f32.mrf.mxu0
      %v523 = vadd.f32 %v482, %v522
      %524 = vmatmul.bf16.gmra.mxu0 %v509
      %v525 = vpop.f32.mrf.mxu0
      %v526 = vadd.f32 %v487, %v525
      %v527 = vpop.f32.mrf.mxu0
      %v528 = vadd.f32 %v492, %v527
      %529 = vdwg.mxu0
      %530 = vmatpush.bf16.msra.mxu0 0
      %531 = vmatpush.bf16.msra.mxu0 0
      %532 = vmatpush.bf16.msra.mxu0 0
      %533 = vmatpush.bf16.msra.mxu0 0
      %534 = vmatpush.bf16.msra.mxu0 0
      %535 = vmatpush.bf16.msra.mxu0 0
      %536 = vmatpush.bf16.msra.mxu0 %v473
      %537 = vmatpush.bf16.msra.mxu0 %v471
      %538 = vmatmul.bf16.gmra.mxu0 %v506
      %v539 = vpop.f32.mrf.mxu0
      %v540 = vadd.f32 %v477, %v539
      %v541 = vpop.f32.mrf.mxu0
      %v542 = vadd.f32 %v482, %v541
      %543 = vmatmul.bf16.gmra.mxu0 %v509
      %v544 = vpop.f32.mrf.mxu0
      %v545 = vadd.f32 %v487, %v544
      %v546 = vpop.f32.mrf.mxu0
      %v547 = vadd.f32 %v492, %v546
      %548 = vdwg.mxu0
      %v549 = vsub.f32 0.0, %v521
      %v550 = vsub.f32 0.0, %v540
      %v551 = vsub.f32 0.0, %v523
      %v552 = vsub.f32 0.0, %v542
      %v553 = vsub.f32 0.0, %v526
      %v554 = vsub.f32 0.0, %v545
      %v555 = vsub.f32 0.0, %v528
      %v556 = vsub.f32 0.0, %v547
      %v557 = vmul.f32 %v549, 1.442695
      %v558 = vpow.pop %v557
      %v559 = vmul.f32 %v550, 1.442695
      %v560 = vpow.pop %v559
      %v561 = vmul.f32 %v551, 1.442695
      %v562 = vpow.pop %v561
      %v563 = vmul.f32 %v552, 1.442695
      %v564 = vpow.pop %v563
      %v565 = vmul.f32 %v553, 1.442695
      %v566 = vpow.pop %v565
      %v567 = vmul.f32 %v554, 1.442695
      %v568 = vpow.pop %v567
      %v569 = vmul.f32 %v555, 1.442695
      %v570 = vpow.pop %v569
      %v571 = vmul.f32 %v556, 1.442695
      %v572 = vpow.pop %v571
      %v573 = vadd.f32 %v558, 1.0
      %v574 = vadd.f32 %v560, 1.0
      %v575 = vadd.f32 %v562, 1.0
      %v576 = vadd.f32 %v564, 1.0
      %v577 = vadd.f32 %v566, 1.0
      %v578 = vadd.f32 %v568, 1.0
      %v579 = vadd.f32 %v570, 1.0
      %v580 = vadd.f32 %v572, 1.0
      %v581 = vrcp.pop %v573
      %v582 = vrcp.pop %v574
      %v583 = vrcp.pop %v575
      %v584 = vrcp.pop %v576
      %v585 = vrcp.pop %v577
      %v586 = vrcp.pop %v578
      %v587 = vrcp.pop %v579
      %v588 = vrcp.pop %v580
      %v589 = vmul.f32 %v521, %v581
      %v590 = vmul.f32 %v540, %v582
      %v591 = vmul.f32 %v523, %v583
      %v592 = vmul.f32 %v542, %v584
      %v593 = vmul.f32 %v526, %v585
      %v594 = vmul.f32 %v545, %v586
      %v595 = vmul.f32 %v528, %v587
      %v596 = vmul.f32 %v547, %v588
      %v597 = vpack.c.bf16 %v591, %v589
      %v598 = vpack.c.bf16 %v592, %v590
      %v599 = vpack.c.bf16 %v595, %v593
      %v600 = vpack.c.bf16 %v596, %v594
      %602 = vset.pattern.permute.xlu0 0
      %603 = vperm.xlu0 %602, %v336
      %v604 = vpop.permute.xlu0 %603
      %v607 = vsel %vm504, %v327, 0
      %609 = vmatpush.bf16.msra.mxu0 0
      %610 = vmatpush.bf16.msra.mxu0 0
      %611 = vmatpush.bf16.msra.mxu0 0
      %612 = vmatpush.bf16.msra.mxu0 0
      %613 = vmatpush.bf16.msra.mxu0 0
      %614 = vmatpush.bf16.msra.mxu0 0
      %615 = vmatpush.bf16.msra.mxu0 %v599
      %616 = vmatpush.bf16.msra.mxu0 %v597
      %617 = vmatmul.bf16.gmra.mxu0 %v607
      %v618 = vpop.f32.mrf.mxu0
      %v619 = vadd.f32 %v604, %v618
      %v620 = vpop.f32.mrf.mxu0
      %621 = vdwg.mxu0
      %622 = vmatpush.bf16.msra.mxu0 0
      %623 = vmatpush.bf16.msra.mxu0 0
      %624 = vmatpush.bf16.msra.mxu0 0
      %625 = vmatpush.bf16.msra.mxu0 0
      %626 = vmatpush.bf16.msra.mxu0 0
      %627 = vmatpush.bf16.msra.mxu0 0
      %628 = vmatpush.bf16.msra.mxu0 %v600
      %629 = vmatpush.bf16.msra.mxu0 %v598
      %630 = vmatmul.bf16.gmra.mxu0 %v607
      %v631 = vpop.f32.mrf.mxu0
      %v632 = vadd.f32 %v604, %v631
      %v633 = vpop.f32.mrf.mxu0
      %634 = vdwg.mxu0
      %v637 = vrot.slane %v632, 4
      %vm638 = vcmask 1043456
      %v639 = vsel %vm638, %v619, %v637
      %641 = vst [vmem:[%s316] sm:$0x77] %v639
      %s642 = smul.u32 2, %s23
      %p643 = scmp.lt.s32.totalorder %s22, 1
      %s644 = scalar_select %p643, %s22, 1
      %p645 = scmp.lt.s32.totalorder %s642, 7
      %s646 = scalar_select %p645, %s642, 7
      %s647 = smul.addr %s644, 8
      %s648 = sadd.s32 %s646, %s647
      %s649 = smul.addr %s648, 4
      %s650 = scalar_lea.vmem %s7, %s649
      // Predicated region
      $region49: #{tpu_custom_call.1} parent=47 // pred_check
        %p651 = pneg %p204
      $region50: #{tpu_custom_call.1} parent=47 // pred_check_branch
        %653 = sbr.rel (%p651) target = $region52
      $region51: #{tpu_custom_call.1} parent=47 // pred_region
        %s654 = smul.u32 2, %s23
      $region52: #{tpu_custom_call.1} parent=47 // pred_fallthru
        _
    $region48: #{tpu_custom_call.1} parent=5 // pred_fallthru
      _
    %p655 = scmp.le.s32.totalorder 2, %s13
    // Predicated region
    $region53: #{tpu_custom_call.1} parent=5 // pred_check
      %p656 = pneg %p655
    $region54: #{tpu_custom_call.1} parent=5 // pred_check_branch
      %658 = sbr.rel (%p656) target = $region56
    $region55: #{tpu_custom_call.1} parent=5 // pred_region
      %s659 = ssub.s32 %s13, 2
      // Predicated region
      $region57: #{tpu_custom_call.1} parent=55 // pred_check
        %p660 = pneg %p210
      $region58: #{tpu_custom_call.1} parent=55 // pred_check_branch
        %662 = sbr.rel (%p660) target = $region60
      $region59: #{tpu_custom_call.1} parent=55 // pred_region
        %s663 = smul.u32 2, %s25
        %p664 = scmp.lt.s32.totalorder %s24, 1
        %s665 = scalar_select %p664, %s24, 1
        %p666 = scmp.lt.s32.totalorder %s663, 7
        %s667 = scalar_select %p666, %s663, 7
        %s668 = smul.addr %s665, 8
        %s669 = sadd.s32 %s667, %s668
        %s670 = smul.addr %s669, 4
        %s671 = scalar_lea.vmem %s7, %s670
      $region60: #{tpu_custom_call.1} parent=55 // pred_fallthru
        _
    $region56: #{tpu_custom_call.1} parent=5 // pred_fallthru
      _
  $region6: #{tpu_custom_call.1} parent=0 // loop_footer
    %s17 = sadd.s32 1, %s13
  $region7: #{tpu_custom_call.1} parent=0 // loop_footer_branch
    %12 = sbr.rel target = $region3
  $region8: #{tpu_custom_call.1} parent=0 // loop_exit
    _

</llo_original>
